<compile_context>
chip_gen: v7x
topology: tpu7x:2x2x1
jax: 0.10.0
libtpu: 0.0.40
codegen_flags: <defaults>
</compile_context>

<pallas_src>
import functools

import jax
import jax.numpy as jnp
from jax import lax
from jax.experimental import pallas as pl
from jax.experimental.pallas import tpu as pltpu


def _label_smoothing_kernel(x_ref, tgt_ref, out_ref, *,
                            confidence, smoothing, n_valid_rows, tile_rows):
    i = pl.program_id(0)

    x = x_ref[...].astype(jnp.float32)                        # (T, C)
    t_rows, n_cls = x.shape

    # Numerically-stable log-softmax pieces (logprobs never materialized):
    #   logprobs = z - lse  with  z = x - max(x),  lse = log(sum(exp(z)))
    m = jnp.max(x, axis=-1, keepdims=True)                    # (T, 1)
    z = x - m                                                 # (T, C)
    lse = jnp.log(jnp.sum(jnp.exp(z), axis=-1, keepdims=True))  # (T, 1)

    # Gather z at the target index via a one-hot mask (no dynamic gather on TPU).
    col_ids = lax.broadcasted_iota(jnp.int32, (t_rows, n_cls), 1)
    tgt = tgt_ref[...]                                        # (T, 1) int32
    z_at_tgt = jnp.sum(jnp.where(col_ids == tgt, z, 0.0),
                       axis=-1, keepdims=True)                # (T, 1)

    nll_loss = lse - z_at_tgt                                 # -logprobs[target]
    smooth_loss = lse - jnp.sum(z, axis=-1, keepdims=True) * (1.0 / n_cls)
    loss = confidence * nll_loss + smoothing * smooth_loss    # (T, 1)

    # Mask out padded tail rows so they do not contribute to the sum.
    row_ids = lax.broadcasted_iota(jnp.int32, (t_rows, 1), 0)
    valid = (row_ids + i * tile_rows) < n_valid_rows
    loss = jnp.where(valid, loss, 0.0)

    # Per-tile partial sum, replicated across a full (8, 128) block so the
    # store is an unmasked, lane-dense vreg write.
    partial = jnp.sum(loss)
    out_ref[...] = jnp.broadcast_to(partial, out_ref.shape).astype(jnp.float32)


def _auto_tile_rows(n, c, itemsize):
    """Pick the largest row tile that fits a conservative VMEM budget."""
    # Budget covers: double-buffered input tile (2 * itemsize * C per row) plus
    # ~3 f32 (T, C) temporaries inside the body (x upcast, z, exp(z)).
    budget_bytes = 24 * (1 << 20)          # safe on v5e/v6e/v7x
    bytes_per_row = (2 * itemsize + 3 * 4) * max(c, 1)
    tile = budget_bytes // bytes_per_row
    tile = max(8, min(1024, int(tile)))
    # Don't over-pad tiny problems: never exceed N rounded up to 8.
    tile = min(tile, ((n + 7) // 8) * 8)
    # Sublane granularity: multiple of 8 for 4-byte dtypes, 16 for 2-byte.
    gran = 16 if itemsize == 2 else 8
    tile = max(gran, (tile // gran) * gran)
    return tile


def label_smoothing_loss(x, target, smoothing=0.1, tile_rows=None):
    """x: (N, C) float logits; target: (N,) int class indices. Returns scalar loss."""
    n, c = x.shape
    confidence = 1.0 - smoothing
    itemsize = jnp.dtype(x.dtype).itemsize

    if tile_rows is None:
        tile_rows = _auto_tile_rows(n, c, itemsize)
    else:
        gran = 16 if itemsize == 2 else 8
        tile_rows = max(gran, (int(tile_rows) // gran) * gran)

    n_pad = ((n + tile_rows - 1) // tile_rows) * tile_rows
    num_tiles = n_pad // tile_rows

    if n_pad != n:
        x = jnp.pad(x, ((0, n_pad - n), (0, 0)))
        target = jnp.pad(target, (0, n_pad - n))

    tgt2d = target.astype(jnp.int32).reshape(n_pad, 1)

    kernel = functools.partial(
        _label_smoothing_kernel,
        confidence=float(confidence),
        smoothing=float(smoothing),
        n_valid_rows=n,
        tile_rows=tile_rows,
    )

    partials = pl.pallas_call(
        kernel,
        # One (8, 128) block of replicated partial sum per grid step.
        out_shape=jax.ShapeDtypeStruct((num_tiles * 8, 128), jnp.float32),
        grid_spec=pltpu.PrefetchScalarGridSpec(
            num_scalar_prefetch=0,
            grid=(num_tiles,),
            in_specs=[
                pl.BlockSpec((tile_rows, c), lambda i: (i, 0)),
                pl.BlockSpec((tile_rows, 1), lambda i: (i, 0)),
            ],
            out_specs=pl.BlockSpec((8, 128), lambda i: (i, 0)),
        ),
        compiler_params=pltpu.CompilerParams(
            # No carried state -> the tile axis is embarrassingly parallel
            # (lets the compiler shard it across the 2 TCs on v7x).
            dimension_semantics=("parallel",),
            # Above the 16/32 MiB scoped defaults; tile budget stays <~24 MiB.
            vmem_limit_bytes=64 * (1 << 20),
        ),
    )(x, tgt2d)

    # Each tile's (8, 128) block holds its partial sum replicated; pick one
    # representative per tile, then reduce and normalize in JAX.
    return jnp.sum(partials[::8, 0]) / n


def _reference_loss(x, target, smoothing):
    # Pure-JAX reference mirroring the PyTorch forward.
    logprobs = jax.nn.log_softmax(x.astype(jnp.float32), axis=-1)
    nll = -jnp.take_along_axis(logprobs, target[:, None], axis=-1)[:, 0]
    smooth = -jnp.mean(logprobs, axis=-1)
    loss = (1.0 - smoothing) * nll + smoothing * smooth
    return jnp.mean(loss)


if __name__ == "__main__":
    key = jax.random.PRNGKey(0)
    kx, kt = jax.random.split(key)

    N, C = 50, 128          # small demo; N not a tile multiple -> exercises masking
    smoothing = 0.1

    x = jax.random.normal(kx, (N, C), dtype=jnp.float32)
    target = jax.random.randint(kt, (N,), 0, C, dtype=jnp.int32)

    ref = _reference_loss(x, target, smoothing)

    # Auto-sized tile (single tile here).
    loss = label_smoothing_loss(x, target, smoothing=smoothing)
    loss = jax.block_until_ready(loss)
    assert jnp.allclose(loss, ref, atol=1e-5, rtol=1e-5), (loss, ref)

    # Small explicit tile to exercise the multi-tile + tail-masked path.
    loss_mt = label_smoothing_loss(x, target, smoothing=smoothing, tile_rows=16)
    loss_mt = jax.block_until_ready(loss_mt)
    assert jnp.allclose(loss_mt, ref, atol=1e-5, rtol=1e-5), (loss_mt, ref)

    print("KERNEL_OK")
</pallas_src>

<mosaic_0001>
module attributes {stable_mosaic.version = 11 : i64} {
  func.func @_label_smoothing_kernel(%arg0: i32, %arg1: memref<56x128xf32, #tpu.memory_space<vmem>>, %arg2: memref<56x1xi32, #tpu.memory_space<vmem>>, %arg3: memref<8x128xf32, #tpu.memory_space<vmem>>) attributes {dimension_semantics = [#tpu.dimension_semantics<parallel>], iteration_bounds = array<i64: 1>, scalar_prefetch = 0 : i64, scratch_operands = 0 : i64, tpu.core_type = #tpu.core_type<tc>, window_params = [{transform_indices = @transform_0, window_bounds = array<i64: 56, 128>}, {transform_indices = @transform_1, window_bounds = array<i64: 56, 1>}, {transform_indices = @transform_2, window_bounds = array<i64: 8, 128>}]} {
    %c0 = arith.constant 0 : index
    %c0_0 = arith.constant 0 : index
    %0 = vector.load %arg1[%c0, %c0_0] : memref<56x128xf32, #tpu.memory_space<vmem>>, vector<56x128xf32>
    %cst = arith.constant dense<0xFF800000> : vector<56xf32>
    %1 = vector.multi_reduction <maximumf>, %0, %cst [1] : vector<56x128xf32> to vector<56xf32>
    %2 = vector.shape_cast %1 : vector<56xf32> to vector<56x1xf32>
    %3 = vector.broadcast %2 : vector<56x1xf32> to vector<56x128xf32>
    %4 = arith.subf %0, %3 : vector<56x128xf32>
    %5 = math.exp %4 : vector<56x128xf32>
    %cst_1 = arith.constant dense<0.000000e+00> : vector<56xf32>
    %6 = vector.multi_reduction <add>, %5, %cst_1 [1] : vector<56x128xf32> to vector<56xf32>
    %7 = vector.shape_cast %6 : vector<56xf32> to vector<56x1xf32>
    %8 = math.log %7 : vector<56x1xf32>
    %9 = tpu.iota {dimensions = array<i32: 1>} : vector<56x128xi32>
    %c0_2 = arith.constant 0 : index
    %c0_3 = arith.constant 0 : index
    %10 = vector.load %arg2[%c0_2, %c0_3] : memref<56x1xi32, #tpu.memory_space<vmem>>, vector<56x1xi32>
    %11 = vector.broadcast %10 : vector<56x1xi32> to vector<56x128xi32>
    %12 = arith.cmpi eq, %9, %11 : vector<56x128xi32>
    %cst_4 = arith.constant 0.000000e+00 : f32
    %13 = vector.broadcast %cst_4 : f32 to vector<56x128xf32>
    %14 = arith.select %12, %4, %13 : vector<56x128xi1>, vector<56x128xf32>
    %cst_5 = arith.constant dense<0.000000e+00> : vector<56xf32>
    %15 = vector.multi_reduction <add>, %14, %cst_5 [1] : vector<56x128xf32> to vector<56xf32>
    %16 = vector.shape_cast %15 : vector<56xf32> to vector<56x1xf32>
    %17 = arith.subf %8, %16 : vector<56x1xf32>
    %cst_6 = arith.constant dense<0.000000e+00> : vector<56xf32>
    %18 = vector.multi_reduction <add>, %4, %cst_6 [1] : vector<56x128xf32> to vector<56xf32>
    %19 = vector.shape_cast %18 : vector<56xf32> to vector<56x1xf32>
    %cst_7 = arith.constant 7.812500e-03 : f32
    %20 = vector.broadcast %cst_7 : f32 to vector<56x1xf32>
    %21 = arith.mulf %19, %20 : vector<56x1xf32>
    %22 = arith.subf %8, %21 : vector<56x1xf32>
    %cst_8 = arith.constant 0.899999976 : f32
    %23 = vector.broadcast %cst_8 : f32 to vector<56x1xf32>
    %24 = arith.mulf %23, %17 : vector<56x1xf32>
    %cst_9 = arith.constant 1.000000e-01 : f32
    %25 = vector.broadcast %cst_9 : f32 to vector<56x1xf32>
    %26 = arith.mulf %25, %22 : vector<56x1xf32>
    %27 = arith.addf %24, %26 : vector<56x1xf32>
    %28 = tpu.iota {dimensions = array<i32: 0>} : vector<56x1xi32>
    %c56_i32 = arith.constant 56 : i32
    %29 = arith.muli %arg0, %c56_i32 : i32
    %30 = vector.broadcast %29 : i32 to vector<56x1xi32>
    %31 = arith.addi %28, %30 : vector<56x1xi32>
    %c50_i32 = arith.constant 50 : i32
    %32 = vector.broadcast %c50_i32 : i32 to vector<56x1xi32>
    %33 = arith.cmpi slt, %31, %32 : vector<56x1xi32>
    %cst_10 = arith.constant 0.000000e+00 : f32
    %34 = vector.broadcast %cst_10 : f32 to vector<56x1xf32>
    %35 = arith.select %33, %27, %34 : vector<56x1xi1>, vector<56x1xf32>
    %36 = vector.shape_cast %35 : vector<56x1xf32> to vector<1x56x1xf32>
    %cst_11 = arith.constant dense<0.000000e+00> : vector<1xf32>
    %37 = vector.multi_reduction <add>, %36, %cst_11 [1, 2] : vector<1x56x1xf32> to vector<1xf32>
    %38 = vector.shape_cast %37 : vector<1xf32> to vector<1x1x1xf32>
    %39 = vector.extract %38[0, 0, 0] : f32 from vector<1x1x1xf32>
    %40 = vector.broadcast %39 : f32 to vector<8x128xf32>
    %c0_12 = arith.constant 0 : index
    %c0_13 = arith.constant 0 : index
    %41 = vector.load %arg3[%c0_12, %c0_13] : memref<8x128xf32, #tpu.memory_space<vmem>>, vector<8x128xf32>
    tpu.vector_store %arg3[%c0_12, %c0_13], %40 {strides = array<i32>} : memref<8x128xf32, #tpu.memory_space<vmem>>, vector<8x128xf32>,
    return
  }
  func.func @transform_0(%arg0: i32) -> (i32, i32) {
    %c0_i32 = arith.constant 0 : i32
    %c0_i32_0 = arith.constant 0 : i32
    return %arg0, %c0_i32 : i32, i32
  }
  func.func @transform_1(%arg0: i32) -> (i32, i32) {
    %c0_i32 = arith.constant 0 : i32
    %c0_i32_0 = arith.constant 0 : i32
    return %arg0, %c0_i32 : i32, i32
  }
  func.func @transform_2(%arg0: i32) -> (i32, i32) {
    %c0_i32 = arith.constant 0 : i32
    %c0_i32_0 = arith.constant 0 : i32
    return %arg0, %c0_i32 : i32, i32
  }
}

</mosaic_0001>

<llo_original>
// kernel: tpu_custom_call.1
$region0: #{tpu_custom_call.1}
  #allocation0 [shape = 'u32[]', space=smem, size = 0x4, offset = 0x4, fixed_abs, tag = 'smem constant byte address 0x4 - core index']
  #allocation1 [shape = 'u32[144,128]{1,0:T(1,128)}', space=vmem, size = 0x12000, scoped, tag = 'internal scratch']
  %s0 = inlined_call_operand.hbm [shape: f32[56,128], index: 0, kind: input, shape index: {}]
  %s1 = inlined_call_operand.hbm [shape: s32[56,1], index: 1, kind: input, shape index: {}]
  %s2 = inlined_call_operand.hbm [shape: f32[8,128], index: 2, kind: output, shape index: {}]
  %s3 = sld [smem:[#allocation0]]
  $region26: #{tpu_custom_call.1} parent=0
    _
  %s5 = ssub.s32 1, %s3
  %s6 = scalar_select 0, %s5, %s3
  $region1: #{tpu_custom_call.1} parent=0
    #allocation2 [shape = 'u8[28672]{0}', space=vmem, size = 0x7000, scoped, tag = 'input window, operand 0, single buffered']
    #allocation3 [shape = 's32[1]{0}', space=sflag, size = 0x4, scoped, tag = 'scoped memory for tpu_custom_call.1']
    #allocation4 [shape = 's32[1]{0}', space=sflag, size = 0x4, scoped, tag = 'scoped memory for tpu_custom_call.1']
    #allocation5 [shape = 'u8[28672]{0}', space=vmem, size = 0x7000, scoped, tag = 'input window, operand 1, single buffered']
    #allocation6 [shape = 's32[1]{0}', space=sflag, size = 0x4, scoped, tag = 'scoped memory for tpu_custom_call.1']
    #allocation7 [shape = 'u8[4096]{0}', space=vmem, size = 0x1000, scoped, tag = 'output window, operand 0, single buffered']
    %7 = vsyncpa [#allocation3], 0
    %8 = vsyncpa [#allocation6], 0
    %9 = vsyncpa [#allocation4], 0
    // Predicated region
    $region2: #{tpu_custom_call.1} parent=1 // pred_check
      _
    $region3: #{tpu_custom_call.1} parent=1 // pred_check_branch
      %11 = sbr.rel (0) target = $region5
    $region4: #{tpu_custom_call.1} parent=1 // pred_region
      %s13 = ssub.s32 896, 896
      %14 = vsyncadd [#allocation3], %s13
      %s15 = sshll.u32 [#allocation2], 4
      %s16 = int_to_ptr.vmem [resolvable:$true] %s15
      %21 = dma.hbm_to_vmem [thread:$0]  %s0, 896, %s16, [#allocation3], 128, 128, 8
    $region5: #{tpu_custom_call.1} parent=1 // pred_fallthru
      _
    // Predicated region
    $region6: #{tpu_custom_call.1} parent=1 // pred_check
      _
    $region7: #{tpu_custom_call.1} parent=1 // pred_check_branch
      %23 = sbr.rel (0) target = $region9
    $region8: #{tpu_custom_call.1} parent=1 // pred_region
      %s25 = ssub.s32 896, 896
      %26 = vsyncadd [#allocation6], %s25
      %s27 = sshll.u32 [#allocation5], 4
      %s28 = int_to_ptr.vmem [resolvable:$true] %s27
      %33 = dma.hbm_to_vmem [thread:$0]  %s1, 896, %s28, [#allocation6], 128, 128, 8
    $region9: #{tpu_custom_call.1} parent=1 // pred_fallthru
      _
    // Predicated region
    $region10: #{tpu_custom_call.1} parent=1 // pred_check
      _
    $region11: #{tpu_custom_call.1} parent=1 // pred_check_branch
      %35 = sbr.rel (0) target = $region13
    $region12: #{tpu_custom_call.1} parent=1 // pred_region
      %36 = dma.done [#allocation3], 896
    $region13: #{tpu_custom_call.1} parent=1 // pred_fallthru
      _
    // Predicated region
    $region14: #{tpu_custom_call.1} parent=1 // pred_check
      _
    $region15: #{tpu_custom_call.1} parent=1 // pred_check_branch
      %38 = sbr.rel (0) target = $region17
    $region16: #{tpu_custom_call.1} parent=1 // pred_region
      %39 = dma.done [#allocation6], 896
    $region17: #{tpu_custom_call.1} parent=1 // pred_fallthru
      _
    %v40 = vld [vmem:[#allocation2] sm:$0xff]
    %v41 = vld [vmem:[#allocation2 + $0x8] sm:$0xff]
    %v42 = vld [vmem:[#allocation2 + $0x10] sm:$0xff]
    %v43 = vld [vmem:[#allocation2 + $0x18] sm:$0xff]
    %v44 = vld [vmem:[#allocation2 + $0x20] sm:$0xff]
    %v45 = vld [vmem:[#allocation2 + $0x28] sm:$0xff]
    %v46 = vld [vmem:[#allocation2 + $0x30] sm:$0xff]
    %47 = vmax.xlane.f32.xlu0 %v40
    %v48 = vpop.xlane.xlu0 %47
    %49 = vmax.xlane.f32.xlu0 %v41
    %v50 = vpop.xlane.xlu0 %49
    %51 = vmax.xlane.f32.xlu0 %v42
    %v52 = vpop.xlane.xlu0 %51
    %53 = vmax.xlane.f32.xlu0 %v43
    %v54 = vpop.xlane.xlu0 %53
    %55 = vmax.xlane.f32.xlu0 %v44
    %v56 = vpop.xlane.xlu0 %55
    %57 = vmax.xlane.f32.xlu0 %v45
    %v58 = vpop.xlane.xlu0 %57
    %59 = vmax.xlane.f32.xlu0 %v46
    %v60 = vpop.xlane.xlu0 %59
    %v61 = vsub.f32 %v40, %v48
    %v62 = vsub.f32 %v41, %v50
    %v63 = vsub.f32 %v42, %v52
    %v64 = vsub.f32 %v43, %v54
    %v65 = vsub.f32 %v44, %v56
    %v66 = vsub.f32 %v45, %v58
    %v67 = vsub.f32 %v46, %v60
    %v68 = vmul.f32 %v61, 1.442695
    %v69 = vpow.pop %v68
    %v70 = vmul.f32 %v62, 1.442695
    %v71 = vpow.pop %v70
    %v72 = vmul.f32 %v63, 1.442695
    %v73 = vpow.pop %v72
    %v74 = vmul.f32 %v64, 1.442695
    %v75 = vpow.pop %v74
    %v76 = vmul.f32 %v65, 1.442695
    %v77 = vpow.pop %v76
    %v78 = vmul.f32 %v66, 1.442695
    %v79 = vpow.pop %v78
    %v80 = vmul.f32 %v67, 1.442695
    %v81 = vpow.pop %v80
    %82 = vadd.xlane.f32.xlu0 %v69
    %v83 = vpop.xlane.xlu0 %82
    %84 = vadd.xlane.f32.xlu0 %v71
    %v85 = vpop.xlane.xlu0 %84
    %86 = vadd.xlane.f32.xlu0 %v73
    %v87 = vpop.xlane.xlu0 %86
    %88 = vadd.xlane.f32.xlu0 %v75
    %v89 = vpop.xlane.xlu0 %88
    %90 = vadd.xlane.f32.xlu0 %v77
    %v91 = vpop.xlane.xlu0 %90
    %92 = vadd.xlane.f32.xlu0 %v79
    %v93 = vpop.xlane.xlu0 %92
    %94 = vadd.xlane.f32.xlu0 %v81
    %v95 = vpop.xlane.xlu0 %94
    %v96 = vlog2.pop %v83
    %v97 = vmul.f32 %v96, 0.6931472
    %v98 = vlog2.pop %v85
    %v99 = vmul.f32 %v98, 0.6931472
    %v100 = vlog2.pop %v87
    %v101 = vmul.f32 %v100, 0.6931472
    %v102 = vlog2.pop %v89
    %v103 = vmul.f32 %v102, 0.6931472
    %v104 = vlog2.pop %v91
    %v105 = vmul.f32 %v104, 0.6931472
    %v106 = vlog2.pop %v93
    %v107 = vmul.f32 %v106, 0.6931472
    %v108 = vlog2.pop %v95
    %v109 = vmul.f32 %v108, 0.6931472
    %v110 = vlaneseq
    %v111 = vand.u32 %v110, 127
    %v112 = vld [vmem:[#allocation5] sm:$0xff]
    %v113 = vld [vmem:[#allocation5 + $0x8] sm:$0xff]
    %v114 = vld [vmem:[#allocation5 + $0x10] sm:$0xff]
    %v115 = vld [vmem:[#allocation5 + $0x18] sm:$0xff]
    %v116 = vld [vmem:[#allocation5 + $0x20] sm:$0xff]
    %v117 = vld [vmem:[#allocation5 + $0x28] sm:$0xff]
    %v118 = vld [vmem:[#allocation5 + $0x30] sm:$0xff]
    %119 = vset.pattern.permute.xlu0 0
    %120 = vperm.xlu0 %119, %v112
    %v121 = vpop.permute.xlu0 %120
    %122 = vset.pattern.permute.xlu0 0
    %123 = vperm.xlu0 %122, %v113
    %v124 = vpop.permute.xlu0 %123
    %125 = vset.pattern.permute.xlu0 0
    %126 = vperm.xlu0 %125, %v114
    %v127 = vpop.permute.xlu0 %126
    %128 = vset.pattern.permute.xlu0 0
    %129 = vperm.xlu0 %128, %v115
    %v130 = vpop.permute.xlu0 %129
    %131 = vset.pattern.permute.xlu0 0
    %132 = vperm.xlu0 %131, %v116
    %v133 = vpop.permute.xlu0 %132
    %134 = vset.pattern.permute.xlu0 0
    %135 = vperm.xlu0 %134, %v117
    %v136 = vpop.permute.xlu0 %135
    %137 = vset.pattern.permute.xlu0 0
    %138 = vperm.xlu0 %137, %v118
    %v139 = vpop.permute.xlu0 %138
    %vm140 = vcmp.eq.s32.totalorder %v111, %v121
    %vm141 = vcmp.eq.s32.totalorder %v111, %v124
    %vm142 = vcmp.eq.s32.totalorder %v111, %v127
    %vm143 = vcmp.eq.s32.totalorder %v111, %v130
    %vm144 = vcmp.eq.s32.totalorder %v111, %v133
    %vm145 = vcmp.eq.s32.totalorder %v111, %v136
    %vm146 = vcmp.eq.s32.totalorder %v111, %v139
    %v147 = vsel %vm140, %v61, 0.0
    %v148 = vsel %vm141, %v62, 0.0
    %v149 = vsel %vm142, %v63, 0.0
    %v150 = vsel %vm143, %v64, 0.0
    %v151 = vsel %vm144, %v65, 0.0
    %v152 = vsel %vm145, %v66, 0.0
    %v153 = vsel %vm146, %v67, 0.0
    %154 = vadd.xlane.f32.xlu0 %v147
    %v155 = vpop.xlane.xlu0 %154
    %156 = vadd.xlane.f32.xlu0 %v148
    %v157 = vpop.xlane.xlu0 %156
    %158 = vadd.xlane.f32.xlu0 %v149
    %v159 = vpop.xlane.xlu0 %158
    %160 = vadd.xlane.f32.xlu0 %v150
    %v161 = vpop.xlane.xlu0 %160
    %162 = vadd.xlane.f32.xlu0 %v151
    %v163 = vpop.xlane.xlu0 %162
    %164 = vadd.xlane.f32.xlu0 %v152
    %v165 = vpop.xlane.xlu0 %164
    %166 = vadd.xlane.f32.xlu0 %v153
    %v167 = vpop.xlane.xlu0 %166
    %v168 = vsub.f32 %v97, %v155
    %v169 = vsub.f32 %v99, %v157
    %v170 = vsub.f32 %v101, %v159
    %v171 = vsub.f32 %v103, %v161
    %v172 = vsub.f32 %v105, %v163
    %v173 = vsub.f32 %v107, %v165
    %v174 = vsub.f32 %v109, %v167
    %175 = vadd.xlane.f32.xlu0 %v61
    %v176 = vpop.xlane.xlu0 %175
    %177 = vadd.xlane.f32.xlu0 %v62
    %v178 = vpop.xlane.xlu0 %177
    %179 = vadd.xlane.f32.xlu0 %v63
    %v180 = vpop.xlane.xlu0 %179
    %181 = vadd.xlane.f32.xlu0 %v64
    %v182 = vpop.xlane.xlu0 %181
    %183 = vadd.xlane.f32.xlu0 %v65
    %v184 = vpop.xlane.xlu0 %183
    %185 = vadd.xlane.f32.xlu0 %v66
    %v186 = vpop.xlane.xlu0 %185
    %187 = vadd.xlane.f32.xlu0 %v67
    %v188 = vpop.xlane.xlu0 %187
    %v189 = vmul.f32 %v176, 0.0078125
    %v190 = vmul.f32 %v178, 0.0078125
    %v191 = vmul.f32 %v180, 0.0078125
    %v192 = vmul.f32 %v182, 0.0078125
    %v193 = vmul.f32 %v184, 0.0078125
    %v194 = vmul.f32 %v186, 0.0078125
    %v195 = vmul.f32 %v188, 0.0078125
    %v196 = vsub.f32 %v97, %v189
    %v197 = vsub.f32 %v99, %v190
    %v198 = vsub.f32 %v101, %v191
    %v199 = vsub.f32 %v103, %v192
    %v200 = vsub.f32 %v105, %v193
    %v201 = vsub.f32 %v107, %v194
    %v202 = vsub.f32 %v109, %v195
    %v203 = vmul.f32 %v168, 0.9
    %v204 = vmul.f32 %v169, 0.9
    %v205 = vmul.f32 %v170, 0.9
    %v206 = vmul.f32 %v171, 0.9
    %v207 = vmul.f32 %v172, 0.9
    %v208 = vmul.f32 %v173, 0.9
    %v209 = vmul.f32 %v174, 0.9
    %v210 = vmul.f32 %v196, 0.1
    %v211 = vmul.f32 %v197, 0.1
    %v212 = vmul.f32 %v198, 0.1
    %v213 = vmul.f32 %v199, 0.1
    %v214 = vmul.f32 %v200, 0.1
    %v215 = vmul.f32 %v201, 0.1
    %v216 = vmul.f32 %v202, 0.1
    %v217 = vadd.f32 %v203, %v210
    %v218 = vadd.f32 %v204, %v211
    %v219 = vadd.f32 %v205, %v212
    %v220 = vadd.f32 %v206, %v213
    %v221 = vadd.f32 %v207, %v214
    %v222 = vadd.f32 %v208, %v215
    %v223 = vadd.f32 %v209, %v216
    %v224 = vlaneseq
    %v225 = vshrl.u32 %v224, 7
    %v226 = vadd.s32 %v225, 8
    %v227 = vadd.s32 %v225, 16
    %v228 = vadd.s32 %v225, 24
    %v229 = vadd.s32 %v225, 32
    %v230 = vadd.s32 %v225, 40
    %v231 = vadd.s32 %v225, 48
    %s232 = smul.u32 0, 56
    %v233 = vstv %s232
    %v234 = vadd.s32 %v225, %v233
    %v235 = vadd.s32 %v226, %v233
    %v236 = vadd.s32 %v227, %v233
    %v237 = vadd.s32 %v228, %v233
    %v238 = vadd.s32 %v229, %v233
    %v239 = vadd.s32 %v230, %v233
    %v240 = vadd.s32 %v231, %v233
    %vm241 = vcmp.lt.s32.totalorder %v234, 50
    %vm242 = vcmp.lt.s32.totalorder %v235, 50
    %vm243 = vcmp.lt.s32.totalorder %v236, 50
    %vm244 = vcmp.lt.s32.totalorder %v237, 50
    %vm245 = vcmp.lt.s32.totalorder %v238, 50
    %vm246 = vcmp.lt.s32.totalorder %v239, 50
    %vm247 = vcmp.lt.s32.totalorder %v240, 50
    %v248 = vsel %vm241, %v217, 0.0
    %v249 = vsel %vm242, %v218, 0.0
    %v250 = vsel %vm243, %v219, 0.0
    %v251 = vsel %vm244, %v220, 0.0
    %v252 = vsel %vm245, %v221, 0.0
    %v253 = vsel %vm246, %v222, 0.0
    %v254 = vsel %vm247, %v223, 0.0
    %vm255 = vcmask 7168
    %v256 = vsel %vm255, %v248, 0.0
    %v257 = vsel %vm255, %v249, 0.0
    %v258 = vadd.f32 %v256, %v257
    %v259 = vsel %vm255, %v250, 0.0
    %v260 = vadd.f32 %v258, %v259
    %v261 = vsel %vm255, %v251, 0.0
    %v262 = vadd.f32 %v260, %v261
    %v263 = vsel %vm255, %v252, 0.0
    %v264 = vadd.f32 %v262, %v263
    %v265 = vsel %vm255, %v253, 0.0
    %v266 = vadd.f32 %v264, %v265
    %v267 = vsel %vm255, %v254, 0.0
    %v268 = vadd.f32 %v266, %v267
    %269 = vadd.xlane.f32.xlu0 %v268
    %v270 = vpop.xlane.xlu0 %269
    %v271 = vrot.slane %v270, 4
    %v272 = vadd.f32 %v270, %v271
    %v273 = vrot.slane %v272, 2
    %v274 = vadd.f32 %v272, %v273
    %v275 = vrot.slane %v274, 1
    %v276 = vadd.f32 %v274, %v275
    %s277 = vtos %v276
    %v278 = vstv %s277
    %279 = vst [vmem:[#allocation7] sm:$0xff] %v278
    // Predicated region
    $region18: #{tpu_custom_call.1} parent=1 // pred_check
      _
    $region19: #{tpu_custom_call.1} parent=1 // pred_check_branch
      %281 = sbr.rel (0) target = $region21
    $region20: #{tpu_custom_call.1} parent=1 // pred_region
      %s283 = ssub.s32 128, 128
      %284 = vsyncadd [#allocation4], %s283
      %s286 = sshll.u32 [#allocation7], 4
      %s287 = int_to_ptr.vmem [resolvable:$true] %s286
      %289 = dma.vmem_to_hbm [thread:$0]  %s287, 128, %s2, [#allocation4]
    $region21: #{tpu_custom_call.1} parent=1 // pred_fallthru
      _
    // Predicated region
    $region22: #{tpu_custom_call.1} parent=1 // pred_check
      _
    $region23: #{tpu_custom_call.1} parent=1 // pred_check_branch
      %291 = sbr.rel (0) target = $region25
    $region24: #{tpu_custom_call.1} parent=1 // pred_region
      %292 = dma.done [#allocation4], 128
    $region25: #{tpu_custom_call.1} parent=1 // pred_fallthru
      _
    %293 = vsyncpa [#allocation3], 1
    %294 = vsyncpa [#allocation6], 1
    %295 = vsyncpa [#allocation4], 1

</llo_original>
